<compile_context>
chip_gen: v5e
topology: v5e:2x2
jax: 0.10.0
libtpu: 0.0.40
codegen_flags: <defaults>
</compile_context>

<pallas_src>
import functools

import jax
import jax.numpy as jnp
from jax import lax
from jax.experimental import pallas as pl
from jax.experimental.pallas import tpu as pltpu


def _round_up(x, m):
    return ((x + m - 1) // m) * m


def _vmem_capacity_bytes():
    try:
        return int(pltpu.get_tpu_info().vmem_capacity_bytes)
    except Exception:
        return 64 << 20  # conservative fallback: v7x per-core VMEM


def _pick_bb(batch):
    """Batch rows per grid step.

    Keeps the 2-D output blocks legal: the sublane dim (bb) must be a
    multiple of 8 or equal the full batch.  (On v7x an even number of batch
    tiles keeps both TensorCores busy; with bb=8 that holds for B % 16 == 0.)
    """
    if batch <= 8:
        return batch
    if batch % 8 == 0:
        return 8
    return batch  # rare fallback: whole batch per step (still legal blocks)


def _pick_block_hw(hw, cin, hidden, bb, tile_budget_bytes, requested=None):
    """Largest 128-multiple divisor of hw whose tiles fit the VMEM budget."""
    if requested is not None:
        assert hw % requested == 0
        assert requested % 128 == 0 or requested == hw
        return requested
    if hw % 128 != 0:
        return hw  # full-extent block (legal, masked loads; perf-only)

    def tile_bytes(blk):
        # double-buffered bf16 x tile + f32 trunk-activation intermediate
        return 2 * bb * cin * blk * 2 + 2 * hidden * blk * 4

    best = 128
    for blk in range(128, hw + 1, 128):
        if hw % blk == 0 and tile_bytes(blk) <= tile_budget_bytes:
            best = blk
    return best


# ----------------------------------------------------------------------------
# Fused kernel.  Grid: (B // bb, HW // block_hw); batch axis "parallel",
# spatial reduction axis "arbitrary" (last).
#
#   x_ref      : (bb, Cin, block_hw)   bf16, one spatial tile per batch block
#   wt_ref     : (hidden, Cin)         bf16 trunk 1x1-conv weight
#   tb_ref     : (hidden, 1)           f32 trunk bias
#   hw_ref     : (hidden, n_out_pad)   f32 head weight (lane-padded to 128)
#   hb_ref     : (1, n_out_pad)        f32 head bias
#   reps_ref   : (bb, hidden_pad)      output (lane-padded)
#   logits_ref : (bb, n_out_pad)       output (lane-padded)
#   acc_ref    : (bb, hidden, 128) f32 lane-dense streamed pool accumulator
# ----------------------------------------------------------------------------
def _fused_trunk_head_kernel(x_ref, wt_ref, tb_ref, hw_ref, hb_ref,
                             reps_ref, logits_ref, acc_ref,
                             *, bb, hidden, hidden_pad, block_hw, inv_hw):
    s = pl.program_id(1)
    lane_dense = (block_hw % 128 == 0)

    @pl.when(s == 0)
    def _init():
        acc_ref[...] = jnp.zeros_like(acc_ref)

    # Unrolled over the small batch block (trace-time constant).
    for b in range(bb):
        # 1x1-conv trunk: (hidden, Cin) @ (Cin, block_hw); bf16 in, f32 out.
        y = jnp.dot(wt_ref[...], x_ref[b], preferred_element_type=jnp.float32)
        y = jnp.maximum(y + tb_ref[...], 0.0)           # bias + ReLU on the VPU
        if lane_dense:
            # Fold the spatial tile into 128 lanes with lane-aligned VPU adds
            # only; the cross-lane reduction is deferred to the finalize.
            part = y[:, :128]
            for i in range(1, block_hw // 128):
                part = part + y[:, i * 128:(i + 1) * 128]
            acc_ref[b] += part
        else:
            # hw not a multiple of 128 (single full-extent tile): plain reduce
            # into lane 0 of the accumulator (remaining lanes stay zero).
            acc_ref[b, :, 0:1] += jnp.sum(y, axis=1, keepdims=True)

    @pl.when(s == pl.num_programs(1) - 1)
    def _finalize():
        # One cross-lane (XLU) reduction per batch block, then the mean.
        pooled = jnp.sum(acc_ref[...], axis=2) * inv_hw        # (bb, hidden) f32
        if hidden_pad != hidden:
            pad = jnp.zeros((bb, hidden_pad - hidden), pooled.dtype)
            reps_ref[...] = jnp.concatenate([pooled, pad], axis=1).astype(
                reps_ref.dtype)
        else:
            reps_ref[...] = pooled.astype(reps_ref.dtype)
        # Fused linear head with M = bb rows; 128-lane-dense output slab.
        logits_ref[...] = (
            jnp.dot(pooled, hw_ref[...], preferred_element_type=jnp.float32)
            + hb_ref[...]).astype(logits_ref.dtype)


def goodbad_forward_pallas(x_nchw, trunk_wt, trunk_b, head_w, head_b,
                           *, block_hw=None):
    """Fused trunk+head forward.  Returns (reps (B, hidden), logits (B, n_out))."""
    B, cin, H, W = x_nchw.shape
    hidden = trunk_wt.shape[0]
    n_out = head_w.shape[1]
    if n_out == 0:
        # TODO(synk): nn.Identity head path (n_good + n_bad == 0) unimplemented.
        raise NotImplementedError("Identity head (n_good + n_bad == 0) not supported")
    hw = H * W

    # bf16 MXU inputs for the dominant (x) HBM stream; f32 accumulation inside.
    # Free reshape (contiguous NCHW) keeps H*W on the lane axis — no transpose.
    x3 = x_nchw.reshape(B, cin, hw).astype(jnp.bfloat16)
    trunk_wt_bf16 = trunk_wt.astype(jnp.bfloat16)
    trunk_b2 = trunk_b.reshape(hidden, 1).astype(jnp.float32)

    # Lane-pad head + reps so every output store is an unmasked vst.
    n_out_pad = _round_up(max(n_out, 1), 128)
    hidden_pad = _round_up(hidden, 128)
    head_w_pad = jnp.zeros((hidden, n_out_pad), jnp.float32).at[:, :n_out].set(
        head_w.astype(jnp.float32))
    head_b_pad = jnp.zeros((1, n_out_pad), jnp.float32).at[:, :n_out].set(
        head_b.reshape(1, n_out).astype(jnp.float32))

    bb = _pick_bb(B)
    vmem_cap = _vmem_capacity_bytes()

    # Resident (non-tile) VMEM: single-buffered params, accumulator, outputs.
    fixed_bytes = (
        hidden * cin * 2 + hidden * 4                   # trunk weight (bf16) / bias
        + hidden * n_out_pad * 4 + n_out_pad * 4        # head weight / bias
        + bb * hidden * 128 * 4                         # pool accumulator scratch
        + 2 * bb * (hidden_pad + n_out_pad) * 4)        # outputs (double-buffered)
    tile_budget = max(1 << 20, int(0.45 * vmem_cap) - fixed_bytes)
    block_hw = _pick_block_hw(hw, cin, hidden, bb, tile_budget, block_hw)
    n_s = hw // block_hw

    tile_bytes = 2 * bb * cin * block_hw * 2 + 2 * hidden * block_hw * 4
    vmem_limit = int(min(vmem_cap,
                         max(fixed_bytes + tile_bytes + (8 << 20), 32 << 20)))

    kernel = functools.partial(
        _fused_trunk_head_kernel, bb=bb, hidden=hidden, hidden_pad=hidden_pad,
        block_hw=block_hw, inv_hw=1.0 / hw)

    def const_spec(shape):
        # Parameters never change across grid steps: single buffer, no re-fetch.
        return pl.BlockSpec(shape, lambda b, s: (0, 0),
                            pipeline_mode=pl.Buffered(1))

    reps_pad, logits_pad = pl.pallas_call(
        kernel,
        out_shape=(
            jax.ShapeDtypeStruct((B, hidden_pad), jnp.float32),
            jax.ShapeDtypeStruct((B, n_out_pad), jnp.float32),
        ),
        grid=(B // bb, n_s),
        in_specs=[
            pl.BlockSpec((bb, cin, block_hw), lambda b, s: (b, 0, s)),
            const_spec((hidden, cin)),
            const_spec((hidden, 1)),
            const_spec((hidden, n_out_pad)),
            const_spec((1, n_out_pad)),
        ],
        out_specs=(
            pl.BlockSpec((bb, hidden_pad), lambda b, s: (b, 0)),
            pl.BlockSpec((bb, n_out_pad), lambda b, s: (b, 0)),
        ),
        scratch_shapes=[pltpu.VMEM((bb, hidden, 128), jnp.float32)],
        compiler_params=pltpu.CompilerParams(
            dimension_semantics=("parallel", "arbitrary"),
            vmem_limit_bytes=vmem_limit,
        ),
    )(x3, trunk_wt_bf16, trunk_b2, head_w_pad, head_b_pad)

    reps = reps_pad[:, :hidden]          # drop lane padding
    logits = logits_pad[:, :n_out]       # drop lane padding
    return reps, logits


class GoodBadRegnetPallas:
    """JAX/Pallas re-implementation of GoodBadRegnet.forward (synthetic trunk)."""

    def __init__(self, c_in, hidden_dim, n_good, n_bad, good_key, bad_key, key):
        self.n_good, self.n_bad = n_good, n_bad
        self.good_key, self.bad_key = good_key, bad_key
        k1, k2, k3, k4 = jax.random.split(key, 4)
        # Synthetic trunk params: 1x1 conv stored as (hidden, Cin) so the kernel
        # contracts over Cin without any input transpose.
        self.trunk_wt = jax.random.normal(k1, (hidden_dim, c_in), jnp.float32) * 0.1
        self.trunk_b = jax.random.normal(k2, (hidden_dim,), jnp.float32) * 0.1
        # Linear head (nn.Linear(hidden_dim, n_good + n_bad)), stored (hidden, n_out).
        n_out = n_good + n_bad
        self.head_w = jax.random.normal(k3, (hidden_dim, n_out), jnp.float32) * 0.1
        self.head_b = jax.random.normal(k4, (n_out,), jnp.float32) * 0.1

    def __call__(self, x_nchw, *, block_hw=None):
        reps, logits = goodbad_forward_pallas(
            x_nchw, self.trunk_wt, self.trunk_b, self.head_w, self.head_b,
            block_hw=block_hw)
        # nn.Flatten() on (B, hidden) is a no-op.
        return {self.good_key: logits[:, :self.n_good],
                self.bad_key: logits[:, self.n_good:],
                "reps": reps}


def _reference(x, model):
    """Pure-JAX reference with the same bf16 rounding of the MXU inputs."""
    B, C, H, W = x.shape
    xb = x.astype(jnp.bfloat16).astype(jnp.float32).reshape(B, C, H * W)
    wtb = model.trunk_wt.astype(jnp.bfloat16).astype(jnp.float32)
    y = jnp.einsum("hc,bcs->bhs", wtb, xb,
                   precision=lax.Precision.HIGHEST) + model.trunk_b[None, :, None]
    reps = jnp.mean(jnp.maximum(y, 0.0), axis=2)                       # (B, hidden)
    logits = jnp.dot(reps, model.head_w,
                     precision=lax.Precision.HIGHEST) + model.head_b[None, :]
    return reps, logits


if __name__ == "__main__":
    key = jax.random.PRNGKey(0)
    k_in, k_in2, k_params = jax.random.split(key, 3)

    B, C, H, W = 2, 4, 16, 16
    hidden_dim, n_good, n_bad = 32, 3, 5

    model = GoodBadRegnetPallas(
        c_in=C, hidden_dim=hidden_dim, n_good=n_good, n_bad=n_bad,
        good_key="good", bad_key="bad", key=k_params)

    x = jax.random.normal(k_in, (B, C, H, W), jnp.float32)   # NCHW, like PyTorch
    ref_reps, ref_logits = _reference(x, model)

    # (1) auto tiling (full H*W block, n_s == 1) and (2) forced 128-wide
    # spatial tiles (exercises the multi-step streamed pool + acc reset).
    for blk in (None, 128):
        out = model(x, block_hw=blk)
        jax.block_until_ready(out)
        assert out["reps"].shape == (B, hidden_dim)
        assert out["good"].shape == (B, n_good)
        assert out["bad"].shape == (B, n_bad)
        assert jnp.allclose(out["reps"], ref_reps, atol=2e-4, rtol=2e-4), blk
        assert jnp.allclose(out["good"], ref_logits[:, :n_good], atol=1e-3, rtol=1e-3), blk
        assert jnp.allclose(out["bad"], ref_logits[:, n_good:], atol=1e-3, rtol=1e-3), blk

    # Odd spatial size (H*W % 128 != 0) exercises the full-extent fallback path.
    x_odd = jax.random.normal(k_in2, (B, C, 10, 10), jnp.float32)
    ref_reps_o, ref_logits_o = _reference(x_odd, model)
    out_o = model(x_odd)
    jax.block_until_ready(out_o)
    assert jnp.allclose(out_o["reps"], ref_reps_o, atol=2e-4, rtol=2e-4)
    assert jnp.allclose(out_o["good"], ref_logits_o[:, :n_good], atol=1e-3, rtol=1e-3)
    assert jnp.allclose(out_o["bad"], ref_logits_o[:, n_good:], atol=1e-3, rtol=1e-3)

    print("KERNEL_OK")
</pallas_src>

<mosaic_0001>
module attributes {stable_mosaic.version = 11 : i64} {
  func.func @_fused_trunk_head_kernel(%arg0: i32, %arg1: i32, %arg2: memref<2x4x256xbf16, #tpu.memory_space<vmem>>, %arg3: memref<32x4xbf16, #tpu.memory_space<vmem>>, %arg4: memref<32x1xf32, #tpu.memory_space<vmem>>, %arg5: memref<32x128xf32, #tpu.memory_space<vmem>>, %arg6: memref<1x128xf32, #tpu.memory_space<vmem>>, %arg7: memref<2x128xf32, #tpu.memory_space<vmem>>, %arg8: memref<2x128xf32, #tpu.memory_space<vmem>>, %arg9: memref<2x32x128xf32, #tpu.memory_space<vmem>>) attributes {dimension_semantics = [#tpu.dimension_semantics<parallel>, #tpu.dimension_semantics<arbitrary>], iteration_bounds = array<i64: 1, 1>, scalar_prefetch = 0 : i64, scratch_operands = 1 : i64, tpu.core_type = #tpu.core_type<tc>, window_params = [{transform_indices = @transform_0, window_bounds = array<i64: 2, 4, 256>}, {pipeline_mode = #tpu.pipeline_mode<synchronous>, transform_indices = @transform_1, window_bounds = array<i64: 32, 4>}, {pipeline_mode = #tpu.pipeline_mode<synchronous>, transform_indices = @transform_2, window_bounds = array<i64: 32, 1>}, {pipeline_mode = #tpu.pipeline_mode<synchronous>, transform_indices = @transform_3, window_bounds = array<i64: 32, 128>}, {pipeline_mode = #tpu.pipeline_mode<synchronous>, transform_indices = @transform_4, window_bounds = array<i64: 1, 128>}, {transform_indices = @transform_5, window_bounds = array<i64: 2, 128>}, {transform_indices = @transform_6, window_bounds = array<i64: 2, 128>}]} {
    %c0_i32 = arith.constant 0 : i32
    %0 = arith.cmpi eq, %arg1, %c0_i32 : i32
    %1 = arith.extui %0 : i1 to i32
    %c0_i32_0 = arith.constant 0 : i32
    %2 = arith.cmpi ne, %1, %c0_i32_0 : i32
    scf.if %2 {
      %cst_30 = arith.constant 0.000000e+00 : f32
      %42 = vector.broadcast %cst_30 : f32 to vector<2x32x128xf32>
      %c0_31 = arith.constant 0 : index
      %c0_32 = arith.constant 0 : index
      %c0_33 = arith.constant 0 : index
      %43 = vector.load %arg9[%c0_31, %c0_32, %c0_33] : memref<2x32x128xf32, #tpu.memory_space<vmem>>, vector<2x32x128xf32>
      tpu.vector_store %arg9[%c0_31, %c0_32, %c0_33], %42 {strides = array<i32>} : memref<2x32x128xf32, #tpu.memory_space<vmem>>, vector<2x32x128xf32>,
    } else {
    }
    %c0 = arith.constant 0 : index
    %c0_1 = arith.constant 0 : index
    %3 = vector.load %arg3[%c0, %c0_1] : memref<32x4xbf16, #tpu.memory_space<vmem>>, vector<32x4xbf16>
    %c0_2 = arith.constant 0 : index
    %c0_3 = arith.constant 0 : index
    %c0_4 = arith.constant 0 : index
    %4 = vector.load %arg2[%c0_2, %c0_3, %c0_4] : memref<2x4x256xbf16, #tpu.memory_space<vmem>>, vector<1x4x256xbf16>
    %5 = vector.shape_cast %4 : vector<1x4x256xbf16> to vector<4x256xbf16>
    %cst = arith.constant dense<0.000000e+00> : vector<32x256xf32>
    %6 = tpu.matmul %3, %5, %cst {dimension_numbers = #tpu.dot_dimension_numbers<[1], [0], [0], [1], [0, 0, 1, 1], [], []>} : vector<32x4xbf16>, vector<4x256xbf16>, vector<32x256xf32> -> vector<32x256xf32>
    %c0_5 = arith.constant 0 : index
    %c0_6 = arith.constant 0 : index
    %7 = vector.load %arg4[%c0_5, %c0_6] : memref<32x1xf32, #tpu.memory_space<vmem>>, vector<32x1xf32>
    %8 = vector.broadcast %7 : vector<32x1xf32> to vector<32x256xf32>
    %9 = arith.addf %6, %8 : vector<32x256xf32>
    %cst_7 = arith.constant 0.000000e+00 : f32
    %10 = vector.broadcast %cst_7 : f32 to vector<32x256xf32>
    %11 = arith.maximumf %9, %10 : vector<32x256xf32>
    %12 = vector.extract_strided_slice %11 {offsets = [0, 0], sizes = [32, 128], strides = [1, 1]} : vector<32x256xf32> to vector<32x128xf32>
    %13 = vector.extract_strided_slice %11 {offsets = [0, 128], sizes = [32, 128], strides = [1, 1]} : vector<32x256xf32> to vector<32x128xf32>
    %14 = arith.addf %12, %13 : vector<32x128xf32>
    %c0_8 = arith.constant 0 : index
    %c0_9 = arith.constant 0 : index
    %c0_10 = arith.constant 0 : index
    %15 = vector.load %arg9[%c0_8, %c0_9, %c0_10] : memref<2x32x128xf32, #tpu.memory_space<vmem>>, vector<1x32x128xf32>
    %16 = vector.shape_cast %15 : vector<1x32x128xf32> to vector<32x128xf32>
    %17 = arith.addf %16, %14 : vector<32x128xf32>
    %c0_11 = arith.constant 0 : index
    %c0_12 = arith.constant 0 : index
    %c0_13 = arith.constant 0 : index
    %18 = vector.load %arg9[%c0_11, %c0_12, %c0_13] : memref<2x32x128xf32, #tpu.memory_space<vmem>>, vector<1x32x128xf32>
    %19 = vector.shape_cast %18 : vector<1x32x128xf32> to vector<32x128xf32>
    %20 = vector.shape_cast %17 : vector<32x128xf32> to vector<1x32x128xf32>
    tpu.vector_store %arg9[%c0_11, %c0_12, %c0_13], %20 {strides = array<i32>} : memref<2x32x128xf32, #tpu.memory_space<vmem>>, vector<1x32x128xf32>,
    %c0_14 = arith.constant 0 : index
    %c0_15 = arith.constant 0 : index
    %21 = vector.load %arg3[%c0_14, %c0_15] : memref<32x4xbf16, #tpu.memory_space<vmem>>, vector<32x4xbf16>
    %c1 = arith.constant 1 : index
    %c0_16 = arith.constant 0 : index
    %c0_17 = arith.constant 0 : index
    %22 = vector.load %arg2[%c1, %c0_16, %c0_17] : memref<2x4x256xbf16, #tpu.memory_space<vmem>>, vector<1x4x256xbf16>
    %23 = vector.shape_cast %22 : vector<1x4x256xbf16> to vector<4x256xbf16>
    %cst_18 = arith.constant dense<0.000000e+00> : vector<32x256xf32>
    %24 = tpu.matmul %21, %23, %cst_18 {dimension_numbers = #tpu.dot_dimension_numbers<[1], [0], [0], [1], [0, 0, 1, 1], [], []>} : vector<32x4xbf16>, vector<4x256xbf16>, vector<32x256xf32> -> vector<32x256xf32>
    %c0_19 = arith.constant 0 : index
    %c0_20 = arith.constant 0 : index
    %25 = vector.load %arg4[%c0_19, %c0_20] : memref<32x1xf32, #tpu.memory_space<vmem>>, vector<32x1xf32>
    %26 = vector.broadcast %25 : vector<32x1xf32> to vector<32x256xf32>
    %27 = arith.addf %24, %26 : vector<32x256xf32>
    %cst_21 = arith.constant 0.000000e+00 : f32
    %28 = vector.broadcast %cst_21 : f32 to vector<32x256xf32>
    %29 = arith.maximumf %27, %28 : vector<32x256xf32>
    %30 = vector.extract_strided_slice %29 {offsets = [0, 0], sizes = [32, 128], strides = [1, 1]} : vector<32x256xf32> to vector<32x128xf32>
    %31 = vector.extract_strided_slice %29 {offsets = [0, 128], sizes = [32, 128], strides = [1, 1]} : vector<32x256xf32> to vector<32x128xf32>
    %32 = arith.addf %30, %31 : vector<32x128xf32>
    %c1_22 = arith.constant 1 : index
    %c0_23 = arith.constant 0 : index
    %c0_24 = arith.constant 0 : index
    %33 = vector.load %arg9[%c1_22, %c0_23, %c0_24] : memref<2x32x128xf32, #tpu.memory_space<vmem>>, vector<1x32x128xf32>
    %34 = vector.shape_cast %33 : vector<1x32x128xf32> to vector<32x128xf32>
    %35 = arith.addf %34, %32 : vector<32x128xf32>
    %c1_25 = arith.constant 1 : index
    %c0_26 = arith.constant 0 : index
    %c0_27 = arith.constant 0 : index
    %36 = vector.load %arg9[%c1_25, %c0_26, %c0_27] : memref<2x32x128xf32, #tpu.memory_space<vmem>>, vector<1x32x128xf32>
    %37 = vector.shape_cast %36 : vector<1x32x128xf32> to vector<32x128xf32>
    %38 = vector.shape_cast %35 : vector<32x128xf32> to vector<1x32x128xf32>
    tpu.vector_store %arg9[%c1_25, %c0_26, %c0_27], %38 {strides = array<i32>} : memref<2x32x128xf32, #tpu.memory_space<vmem>>, vector<1x32x128xf32>,
    %c0_i32_28 = arith.constant 0 : i32
    %39 = arith.cmpi eq, %arg1, %c0_i32_28 : i32
    %40 = arith.extui %39 : i1 to i32
    %c0_i32_29 = arith.constant 0 : i32
    %41 = arith.cmpi ne, %40, %c0_i32_29 : i32
    scf.if %41 {
      %c0_30 = arith.constant 0 : index
      %c0_31 = arith.constant 0 : index
      %c0_32 = arith.constant 0 : index
      %42 = vector.load %arg9[%c0_30, %c0_31, %c0_32] : memref<2x32x128xf32, #tpu.memory_space<vmem>>, vector<2x32x128xf32>
      %cst_33 = arith.constant dense<0.000000e+00> : vector<2x32xf32>
      %43 = vector.multi_reduction <add>, %42, %cst_33 [2] : vector<2x32x128xf32> to vector<2x32xf32>
      %cst_34 = arith.constant 3.906250e-03 : f32
      %44 = vector.broadcast %cst_34 : f32 to vector<2x32xf32>
      %45 = arith.mulf %43, %44 : vector<2x32xf32>
      %cst_35 = arith.constant 0.000000e+00 : f32
      %46 = vector.broadcast %cst_35 : f32 to vector<2x96xf32>
      %47 = tpu.concatenate %45, %46 in 1 : vector<2x32xf32>, vector<2x96xf32> -> vector<2x128xf32>
      %c0_36 = arith.constant 0 : index
      %c0_37 = arith.constant 0 : index
      %48 = vector.load %arg7[%c0_36, %c0_37] : memref<2x128xf32, #tpu.memory_space<vmem>>, vector<2x128xf32>
      tpu.vector_store %arg7[%c0_36, %c0_37], %47 {strides = array<i32>} : memref<2x128xf32, #tpu.memory_space<vmem>>, vector<2x128xf32>,
      %c0_38 = arith.constant 0 : index
      %c0_39 = arith.constant 0 : index
      %49 = vector.load %arg5[%c0_38, %c0_39] : memref<32x128xf32, #tpu.memory_space<vmem>>, vector<32x128xf32>
      %cst_40 = arith.constant dense<0.000000e+00> : vector<2x128xf32>
      %50 = tpu.matmul %45, %49, %cst_40 {dimension_numbers = #tpu.dot_dimension_numbers<[1], [0], [0], [1], [0, 0, 1, 1], [], []>} : vector<2x32xf32>, vector<32x128xf32>, vector<2x128xf32> -> vector<2x128xf32>
      %c0_41 = arith.constant 0 : index
      %c0_42 = arith.constant 0 : index
      %51 = vector.load %arg6[%c0_41, %c0_42] : memref<1x128xf32, #tpu.memory_space<vmem>>, vector<1x128xf32>
      %52 = vector.broadcast %51 : vector<1x128xf32> to vector<2x128xf32>
      %53 = arith.addf %50, %52 : vector<2x128xf32>
      %c0_43 = arith.constant 0 : index
      %c0_44 = arith.constant 0 : index
      %54 = vector.load %arg8[%c0_43, %c0_44] : memref<2x128xf32, #tpu.memory_space<vmem>>, vector<2x128xf32>
      tpu.vector_store %arg8[%c0_43, %c0_44], %53 {strides = array<i32>} : memref<2x128xf32, #tpu.memory_space<vmem>>, vector<2x128xf32>,
    } else {
    }
    return
  }
  func.func @transform_0(%arg0: i32, %arg1: i32) -> (i32, i32, i32) {
    %c0_i32 = arith.constant 0 : i32
    %c0_i32_0 = arith.constant 0 : i32
    return %arg0, %c0_i32, %arg1 : i32, i32, i32
  }
  func.func @transform_1(%arg0: i32, %arg1: i32) -> (i32, i32) {
    %c0_i32 = arith.constant 0 : i32
    %c0_i32_0 = arith.constant 0 : i32
    %c0_i32_1 = arith.constant 0 : i32
    return %c0_i32, %c0_i32_0 : i32, i32
  }
  func.func @transform_2(%arg0: i32, %arg1: i32) -> (i32, i32) {
    %c0_i32 = arith.constant 0 : i32
    %c0_i32_0 = arith.constant 0 : i32
    %c0_i32_1 = arith.constant 0 : i32
    return %c0_i32, %c0_i32_0 : i32, i32
  }
  func.func @transform_3(%arg0: i32, %arg1: i32) -> (i32, i32) {
    %c0_i32 = arith.constant 0 : i32
    %c0_i32_0 = arith.constant 0 : i32
    %c0_i32_1 = arith.constant 0 : i32
    return %c0_i32, %c0_i32_0 : i32, i32
  }
  func.func @transform_4(%arg0: i32, %arg1: i32) -> (i32, i32) {
    %c0_i32 = arith.constant 0 : i32
    %c0_i32_0 = arith.constant 0 : i32
    %c0_i32_1 = arith.constant 0 : i32
    return %c0_i32, %c0_i32_0 : i32, i32
  }
  func.func @transform_5(%arg0: i32, %arg1: i32) -> (i32, i32) {
    %c0_i32 = arith.constant 0 : i32
    %c0_i32_0 = arith.constant 0 : i32
    return %arg0, %c0_i32 : i32, i32
  }
  func.func @transform_6(%arg0: i32, %arg1: i32) -> (i32, i32) {
    %c0_i32 = arith.constant 0 : i32
    %c0_i32_0 = arith.constant 0 : i32
    return %arg0, %c0_i32 : i32, i32
  }
}

</mosaic_0001>

<llo_original>
// kernel: tpu_custom_call.1
$region0: #{tpu_custom_call.1}
  #allocation0 [shape = 'u32[]', space=smem, size = 0x4, offset = 0x4, fixed_abs, tag = 'smem constant byte address 0x4 - core index']
  #allocation1 [shape = 'u32[72,128]{1,0:T(1,128)}', space=vmem, size = 0x9000, scoped, tag = 'internal scratch']
  #allocation2 [shape = 'f32[2,32,128]{2,1,0:T(8,128)}', space=vmem, size = 0x8000, scoped, tag = 'scratch operand']
  %s0 = inlined_call_operand.vmem [shape: bf16[2,4,256], index: 0, kind: input, shape index: {}]
  %s1 = inlined_call_operand.vmem [shape: bf16[32,4], index: 1, kind: input, shape index: {}]
  %s2 = inlined_call_operand.vmem [shape: f32[32,1], index: 2, kind: input, shape index: {}]
  %s3 = inlined_call_operand.vmem [shape: f32[32,128], index: 3, kind: input, shape index: {}]
  %s4 = inlined_call_operand.vmem [shape: f32[1,128], index: 4, kind: input, shape index: {}]
  %s5 = inlined_call_operand.hbm [shape: f32[2,128], index: 5, kind: output, shape index: {0}]
  %s6 = inlined_call_operand.hbm [shape: f32[2,128], index: 6, kind: output, shape index: {1}]
  %7 = xla_tuple %s5, %s6
  %s8 = sld [smem:[#allocation0]]
  $region46: #{tpu_custom_call.1} parent=0
    _
  %s10 = ssub.s32 1, %s8
  %s11 = scalar_select 0, %s10, %s8
  $region1: #{tpu_custom_call.1} parent=0
    #allocation3 [shape = 'u8[1024]{0}', space=vmem, size = 0x400, scoped, tag = 'output window, operand 0, single buffered']
    #allocation4 [shape = 's32[1]{0}', space=sflag, size = 0x4, scoped, tag = 'scoped memory for tpu_custom_call.1']
    #allocation5 [shape = 'u8[1024]{0}', space=vmem, size = 0x400, scoped, tag = 'output window, operand 1, single buffered']
    #allocation6 [shape = 's32[1]{0}', space=sflag, size = 0x4, scoped, tag = 'scoped memory for tpu_custom_call.1']
    %12 = vsyncpa [#allocation4], 0
    %13 = vsyncpa [#allocation6], 0
    // Predicated region
    $region2: #{tpu_custom_call.1} parent=1 // pred_check
      _
    $region3: #{tpu_custom_call.1} parent=1 // pred_check_branch
      %15 = sbr.rel (0) target = $region5
    $region4: #{tpu_custom_call.1} parent=1 // pred_region
      _
    $region5: #{tpu_custom_call.1} parent=1 // pred_fallthru
      _
    // Predicated region
    $region6: #{tpu_custom_call.1} parent=1 // pred_check
      _
    $region7: #{tpu_custom_call.1} parent=1 // pred_check_branch
      %17 = sbr.rel (0) target = $region9
    $region8: #{tpu_custom_call.1} parent=1 // pred_region
      _
    $region9: #{tpu_custom_call.1} parent=1 // pred_fallthru
      _
    // Predicated region
    $region10: #{tpu_custom_call.1} parent=1 // pred_check
      _
    $region11: #{tpu_custom_call.1} parent=1 // pred_check_branch
      %19 = sbr.rel (0) target = $region13
    $region12: #{tpu_custom_call.1} parent=1 // pred_region
      _
    $region13: #{tpu_custom_call.1} parent=1 // pred_fallthru
      _
    // Predicated region
    $region14: #{tpu_custom_call.1} parent=1 // pred_check
      _
    $region15: #{tpu_custom_call.1} parent=1 // pred_check_branch
      %21 = sbr.rel (0) target = $region17
    $region16: #{tpu_custom_call.1} parent=1 // pred_region
      _
    $region17: #{tpu_custom_call.1} parent=1 // pred_fallthru
      _
    // Predicated region
    $region18: #{tpu_custom_call.1} parent=1 // pred_check
      _
    $region19: #{tpu_custom_call.1} parent=1 // pred_check_branch
      %23 = sbr.rel (0) target = $region21
    $region20: #{tpu_custom_call.1} parent=1 // pred_region
      _
    $region21: #{tpu_custom_call.1} parent=1 // pred_fallthru
      _
    %p25 = scmp.eq.s32.totalorder 0, 0
    // Predicated region
    $region22: #{tpu_custom_call.1} parent=1 // pred_check
      %p26 = pneg %p25
    $region23: #{tpu_custom_call.1} parent=1 // pred_check_branch
      %28 = sbr.rel (%p26) target = $region25
    $region24: #{tpu_custom_call.1} parent=1 // pred_region
      %29 = vst [vmem:[#allocation2] sm:$0xff] 0.0
      %30 = vst [vmem:[#allocation2 + $0x8] sm:$0xff] 0.0
      %31 = vst [vmem:[#allocation2 + $0x10] sm:$0xff] 0.0
      %32 = vst [vmem:[#allocation2 + $0x18] sm:$0xff] 0.0
      %33 = vst [vmem:[#allocation2 + $0x20] sm:$0xff] 0.0
      %34 = vst [vmem:[#allocation2 + $0x28] sm:$0xff] 0.0
      %35 = vst [vmem:[#allocation2 + $0x30] sm:$0xff] 0.0
      %36 = vst [vmem:[#allocation2 + $0x38] sm:$0xff] 0.0
    $region25: #{tpu_custom_call.1} parent=1 // pred_fallthru
      _
    %v37 = vld [vmem:[%s1] sm:$0xf]
    %v38 = vld [vmem:[%s1 + $0x4] sm:$0xf]
    %v39 = vld [vmem:[%s1 + $0x8] sm:$0xf]
    %v40 = vld [vmem:[%s1 + $0xc] sm:$0xf]
    %v41 = vld [vmem:[%s0] sm:$0xf]
    %v42 = vld [vmem:[%s2] sm:$0xff]
    %v43 = vld [vmem:[%s2 + $0x8] sm:$0xff]
    %v44 = vld [vmem:[%s2 + $0x10] sm:$0xff]
    %v45 = vld [vmem:[%s2 + $0x18] sm:$0xff]
    %47 = vset.pattern.permute.xlu0 0
    %48 = vperm.xlu0 %47, %v42
    %v49 = vpop.permute.xlu0 %48
    %52 = vset.pattern.permute.xlu0 0
    %53 = vperm.xlu0 %52, %v43
    %v54 = vpop.permute.xlu0 %53
    %57 = vset.pattern.permute.xlu0 0
    %58 = vperm.xlu0 %57, %v44
    %v59 = vpop.permute.xlu0 %58
    %62 = vset.pattern.permute.xlu0 0
    %63 = vperm.xlu0 %62, %v45
    %v64 = vpop.permute.xlu0 %63
    %v70 = vunpack.c.l.b16 %v37
    %v71 = vunpack.c.l.b16 %v38
    %v72 = vunpack.c.l.b16 %v39
    %v73 = vunpack.c.l.b16 %v40
    %v74 = vpack.c.b16 %v71, %v70
    %v75 = vpack.c.b16 %v73, %v72
    %77 = vst [vmem:[#allocation1] ss:$4 sm:$0xff] %v41
    %v78 = vld.sshfl [vmem:[#allocation1] sm:$0xff pattern:$0x73625140]
    %v79 = vld.sshfl [vmem:[#allocation1 + $0x8] sm:$0xff pattern:$0x73625140]
    %vm80 = vcmask 31744
    %v82 = vsel %vm80, %v74, 0
    %v85 = vsel %vm80, %v75, 0
    %vm87 = vcmask 1041408
    %v88 = vsel %vm87, %v78, 0
    %v90 = vsel %vm87, %v79, 0
    %92 = vmatpush.bf16.msra.mxu0 0
    %93 = vmatpush.bf16.msra.mxu0 0
    %94 = vmatpush.bf16.msra.mxu0 0
    %95 = vmatpush.bf16.msra.mxu0 0
    %96 = vmatpush.bf16.msra.mxu0 0
    %97 = vmatpush.bf16.msra.mxu0 0
    %98 = vmatpush.bf16.msra.mxu0 0
    %99 = vmatpush.bf16.msra.mxu0 %v88
    %100 = vmatmul.bf16.gmra.mxu0 %v82
    %v101 = vpop.f32.mrf.mxu0
    %v102 = vadd.f32 %v49, %v101
    %v103 = vpop.f32.mrf.mxu0
    %v104 = vadd.f32 %v54, %v103
    %105 = vmatmul.bf16.gmra.mxu0 %v85
    %v106 = vpop.f32.mrf.mxu0
    %v107 = vadd.f32 %v59, %v106
    %v108 = vpop.f32.mrf.mxu0
    %v109 = vadd.f32 %v64, %v108
    %110 = vdwg.mxu0
    %111 = vmatpush.bf16.msra.mxu0 0
    %112 = vmatpush.bf16.msra.mxu0 0
    %113 = vmatpush.bf16.msra.mxu0 0
    %114 = vmatpush.bf16.msra.mxu0 0
    %115 = vmatpush.bf16.msra.mxu0 0
    %116 = vmatpush.bf16.msra.mxu0 0
    %117 = vmatpush.bf16.msra.mxu0 0
    %118 = vmatpush.bf16.msra.mxu0 %v90
    %119 = vmatmul.bf16.gmra.mxu0 %v82
    %v120 = vpop.f32.mrf.mxu0
    %v121 = vadd.f32 %v49, %v120
    %v122 = vpop.f32.mrf.mxu0
    %v123 = vadd.f32 %v54, %v122
    %124 = vmatmul.bf16.gmra.mxu0 %v85
    %v125 = vpop.f32.mrf.mxu0
    %v126 = vadd.f32 %v59, %v125
    %v127 = vpop.f32.mrf.mxu0
    %v128 = vadd.f32 %v64, %v127
    %129 = vdwg.mxu0
    %v130 = vmax.f32 %v102, 0.0
    %v131 = vmax.f32 %v121, 0.0
    %v132 = vmax.f32 %v104, 0.0
    %v133 = vmax.f32 %v123, 0.0
    %v134 = vmax.f32 %v107, 0.0
    %v135 = vmax.f32 %v126, 0.0
    %v136 = vmax.f32 %v109, 0.0
    %v137 = vmax.f32 %v128, 0.0
    %v138 = vadd.f32 %v130, %v131
    %v139 = vadd.f32 %v132, %v133
    %v140 = vadd.f32 %v134, %v135
    %v141 = vadd.f32 %v136, %v137
    %v142 = vld [vmem:[#allocation2] sm:$0xff]
    %v143 = vld [vmem:[#allocation2 + $0x8] sm:$0xff]
    %v144 = vld [vmem:[#allocation2 + $0x10] sm:$0xff]
    %v145 = vld [vmem:[#allocation2 + $0x18] sm:$0xff]
    %v146 = vadd.f32 %v142, %v138
    %v147 = vadd.f32 %v143, %v139
    %v148 = vadd.f32 %v144, %v140
    %v149 = vadd.f32 %v145, %v141
    %150 = vst [vmem:[#allocation2] sm:$0xff] %v146
    %151 = vst [vmem:[#allocation2 + $0x8] sm:$0xff] %v147
    %152 = vst [vmem:[#allocation2 + $0x10] sm:$0xff] %v148
    %153 = vst [vmem:[#allocation2 + $0x18] sm:$0xff] %v149
    %v154 = vld [vmem:[%s1] sm:$0xf]
    %v155 = vld [vmem:[%s1 + $0x4] sm:$0xf]
    %v156 = vld [vmem:[%s1 + $0x8] sm:$0xf]
    %v157 = vld [vmem:[%s1 + $0xc] sm:$0xf]
    %s158 = scalar_lea.vmem %s0, 4
    %v159 = vld [vmem:[%s158] sm:$0xf]
    %v160 = vld [vmem:[%s2] sm:$0xff]
    %v161 = vld [vmem:[%s2 + $0x8] sm:$0xff]
    %v162 = vld [vmem:[%s2 + $0x10] sm:$0xff]
    %v163 = vld [vmem:[%s2 + $0x18] sm:$0xff]
    %165 = vset.pattern.permute.xlu0 0
    %166 = vperm.xlu0 %165, %v160
    %v167 = vpop.permute.xlu0 %166
    %170 = vset.pattern.permute.xlu0 0
    %171 = vperm.xlu0 %170, %v161
    %v172 = vpop.permute.xlu0 %171
    %175 = vset.pattern.permute.xlu0 0
    %176 = vperm.xlu0 %175, %v162
    %v177 = vpop.permute.xlu0 %176
    %180 = vset.pattern.permute.xlu0 0
    %181 = vperm.xlu0 %180, %v163
    %v182 = vpop.permute.xlu0 %181
    %v188 = vunpack.c.l.b16 %v154
    %v189 = vunpack.c.l.b16 %v155
    %v190 = vunpack.c.l.b16 %v156
    %v191 = vunpack.c.l.b16 %v157
    %v192 = vpack.c.b16 %v189, %v188
    %v193 = vpack.c.b16 %v191, %v190
    %195 = vst [vmem:[#allocation1] ss:$4 sm:$0xff] %v159
    %v196 = vld.sshfl [vmem:[#allocation1] sm:$0xff pattern:$0x73625140]
    %v197 = vld.sshfl [vmem:[#allocation1 + $0x8] sm:$0xff pattern:$0x73625140]
    %v199 = vsel %vm80, %v192, 0
    %v202 = vsel %vm80, %v193, 0
    %v204 = vsel %vm87, %v196, 0
    %v206 = vsel %vm87, %v197, 0
    %208 = vmatpush.bf16.msra.mxu0 0
    %209 = vmatpush.bf16.msra.mxu0 0
    %210 = vmatpush.bf16.msra.mxu0 0
    %211 = vmatpush.bf16.msra.mxu0 0
    %212 = vmatpush.bf16.msra.mxu0 0
    %213 = vmatpush.bf16.msra.mxu0 0
    %214 = vmatpush.bf16.msra.mxu0 0
    %215 = vmatpush.bf16.msra.mxu0 %v204
    %216 = vmatmul.bf16.gmra.mxu0 %v199
    %v217 = vpop.f32.mrf.mxu0
    %v218 = vadd.f32 %v167, %v217
    %v219 = vpop.f32.mrf.mxu0
    %v220 = vadd.f32 %v172, %v219
    %221 = vmatmul.bf16.gmra.mxu0 %v202
    %v222 = vpop.f32.mrf.mxu0
    %v223 = vadd.f32 %v177, %v222
    %v224 = vpop.f32.mrf.mxu0
    %v225 = vadd.f32 %v182, %v224
    %226 = vdwg.mxu0
    %227 = vmatpush.bf16.msra.mxu0 0
    %228 = vmatpush.bf16.msra.mxu0 0
    %229 = vmatpush.bf16.msra.mxu0 0
    %230 = vmatpush.bf16.msra.mxu0 0
    %231 = vmatpush.bf16.msra.mxu0 0
    %232 = vmatpush.bf16.msra.mxu0 0
    %233 = vmatpush.bf16.msra.mxu0 0
    %234 = vmatpush.bf16.msra.mxu0 %v206
    %235 = vmatmul.bf16.gmra.mxu0 %v199
    %v236 = vpop.f32.mrf.mxu0
    %v237 = vadd.f32 %v167, %v236
    %v238 = vpop.f32.mrf.mxu0
    %v239 = vadd.f32 %v172, %v238
    %240 = vmatmul.bf16.gmra.mxu0 %v202
    %v241 = vpop.f32.mrf.mxu0
    %v242 = vadd.f32 %v177, %v241
    %v243 = vpop.f32.mrf.mxu0
    %v244 = vadd.f32 %v182, %v243
    %245 = vdwg.mxu0
    %v246 = vmax.f32 %v218, 0.0
    %v247 = vmax.f32 %v237, 0.0
    %v248 = vmax.f32 %v220, 0.0
    %v249 = vmax.f32 %v239, 0.0
    %v250 = vmax.f32 %v223, 0.0
    %v251 = vmax.f32 %v242, 0.0
    %v252 = vmax.f32 %v225, 0.0
    %v253 = vmax.f32 %v244, 0.0
    %v254 = vadd.f32 %v246, %v247
    %v255 = vadd.f32 %v248, %v249
    %v256 = vadd.f32 %v250, %v251
    %v257 = vadd.f32 %v252, %v253
    %s258 = scalar_lea.vmem [#allocation2], 32
    %v259 = vld [vmem:[%s258] sm:$0xff]
    %v260 = vld [vmem:[%s258 + $0x8] sm:$0xff]
    %v261 = vld [vmem:[%s258 + $0x10] sm:$0xff]
    %v262 = vld [vmem:[%s258 + $0x18] sm:$0xff]
    %v263 = vadd.f32 %v259, %v254
    %v264 = vadd.f32 %v260, %v255
    %v265 = vadd.f32 %v261, %v256
    %v266 = vadd.f32 %v262, %v257
    %267 = vst [vmem:[%s258] sm:$0xff] %v263
    %268 = vst [vmem:[%s258 + $0x8] sm:$0xff] %v264
    %269 = vst [vmem:[%s258 + $0x10] sm:$0xff] %v265
    %270 = vst [vmem:[%s258 + $0x18] sm:$0xff] %v266
    // Predicated region
    $region26: #{tpu_custom_call.1} parent=1 // pred_check
      %p271 = pneg %p25
    $region27: #{tpu_custom_call.1} parent=1 // pred_check_branch
      %273 = sbr.rel (%p271) target = $region29
    $region28: #{tpu_custom_call.1} parent=1 // pred_region
      %v274 = vld [vmem:[#allocation2] sm:$0xff]
      %v275 = vld [vmem:[#allocation2 + $0x8] sm:$0xff]
      %v276 = vld [vmem:[#allocation2 + $0x10] sm:$0xff]
      %v277 = vld [vmem:[#allocation2 + $0x18] sm:$0xff]
      %v278 = vld [vmem:[#allocation2 + $0x20] sm:$0xff]
      %v279 = vld [vmem:[#allocation2 + $0x28] sm:$0xff]
      %v280 = vld [vmem:[#allocation2 + $0x30] sm:$0xff]
      %v281 = vld [vmem:[#allocation2 + $0x38] sm:$0xff]
      %282 = vadd.xlane.f32.xlu0 %v274
      %v283 = vpop.xlane.xlu0 %282
      %284 = vadd.xlane.f32.xlu0 %v275
      %v285 = vpop.xlane.xlu0 %284
      %286 = vadd.xlane.f32.xlu0 %v276
      %v287 = vpop.xlane.xlu0 %286
      %288 = vadd.xlane.f32.xlu0 %v277
      %v289 = vpop.xlane.xlu0 %288
      %290 = vadd.xlane.f32.xlu0 %v278
      %v291 = vpop.xlane.xlu0 %290
      %292 = vadd.xlane.f32.xlu0 %v279
      %v293 = vpop.xlane.xlu0 %292
      %294 = vadd.xlane.f32.xlu0 %v280
      %v295 = vpop.xlane.xlu0 %294
      %296 = vadd.xlane.f32.xlu0 %v281
      %v297 = vpop.xlane.xlu0 %296
      %v298 = vmul.f32 %v283, 0.00390625
      %v299 = vmul.f32 %v285, 0.00390625
      %v300 = vmul.f32 %v287, 0.00390625
      %v301 = vmul.f32 %v289, 0.00390625
      %v302 = vmul.f32 %v291, 0.00390625
      %v303 = vmul.f32 %v293, 0.00390625
      %v304 = vmul.f32 %v295, 0.00390625
      %v305 = vmul.f32 %v297, 0.00390625
      %v314 = vlaneseq
      %v315 = vand.u32 %v314, 127
      %v316 = vperm.slane %v298, %v315
      %v317 = vadd.s32 %v315, 4294967288
      %v318 = vperm.slane %v299, %v317
      %vm319 = vcmask 130112
      %v320 = vsel %vm319, %v318, %v316
      %v321 = vadd.s32 %v315, 4294967280
      %v322 = vperm.slane %v300, %v321
      %vm323 = vcmask 195712
      %v324 = vsel %vm323, %v322, %v320
      %v325 = vadd.s32 %v315, 4294967272
      %v326 = vperm.slane %v301, %v325
      %vm327 = vcmask 261312
      %v328 = vsel %vm327, %v326, %v324
      %v329 = vperm.slane %v302, %v315
      %v330 = vperm.slane %v303, %v317
      %v331 = vsel %vm319, %v330, %v329
      %v332 = vperm.slane %v304, %v321
      %v333 = vsel %vm323, %v332, %v331
      %v334 = vperm.slane %v305, %v325
      %v335 = vsel %vm327, %v334, %v333
      %vm336 = vcmask 1041409
      %v337 = vsel %vm336, %v335, %v328
      %vm339 = vcmask 261120
      %v340 = vsel %vm339, %v337, 0.0
      %341 = vst [vmem:[#allocation3] sm:$0x3] %v340
      %v342 = vld [vmem:[%s3] sm:$0xff]
      %v343 = vld [vmem:[%s3 + $0x8] sm:$0xff]
      %v344 = vld [vmem:[%s3 + $0x10] sm:$0xff]
      %v345 = vld [vmem:[%s3 + $0x18] sm:$0xff]
      %v346 = vld [vmem:[%s4] sm:$0x1]
      %v348 = vperm.slane %v346, 0
      %v350 = vsel %vm339, %v337, 0
      %352 = vmatpush.msra.mxu0 0.0
      %353 = vmatpush.msra.mxu0 0.0
      %354 = vmatpush.msra.mxu0 0.0
      %355 = vmatpush.msra.mxu0 0.0
      %356 = vmatpush.msra.mxu0 0.0
      %357 = vmatpush.msra.mxu0 0.0
      %358 = vmatpush.msra.mxu0 0.0
      %359 = vmatpush.msra.mxu0 0.0
      %360 = vmatpush.msra.mxu0 0.0
      %361 = vmatpush.msra.mxu0 0.0
      %362 = vmatpush.msra.mxu0 0.0
      %363 = vmatpush.msra.mxu0 0.0
      %364 = vmatpush.msra.mxu0 %v345
      %365 = vmatpush.msra.mxu0 %v344
      %366 = vmatpush.msra.mxu0 %v343
      %367 = vmatpush.msra.mxu0 %v342
      %368 = vmatmul.f32.gmra.mxu0 %v350
      %v369 = vpop.f32.mrf.mxu0
      %v370 = vadd.f32 %v348, %v369
      %371 = vdwg.mxu0
      %372 = vst [vmem:[#allocation5] sm:$0x3] %v370
    $region29: #{tpu_custom_call.1} parent=1 // pred_fallthru
      _
    // Predicated region
    $region30: #{tpu_custom_call.1} parent=1 // pred_check
      _
    $region31: #{tpu_custom_call.1} parent=1 // pred_check_branch
      %374 = sbr.rel (0) target = $region33
    $region32: #{tpu_custom_call.1} parent=1 // pred_region
      %376 = vsyncadd [#allocation4], 0
      %s378 = sshll.u32 [#allocation3], 4
      %s379 = int_to_ptr.vmem [resolvable:$true] %s378
      %s380 = sshll.u32 %s5, 4
      %s381 = int_to_ptr.hbm [resolvable:$true] %s380
      %383 = dma.vmem_to_hbm [thread:$0]  %s379, 32, %s381, [#allocation4]
    $region33: #{tpu_custom_call.1} parent=1 // pred_fallthru
      _
    // Predicated region
    $region34: #{tpu_custom_call.1} parent=1 // pred_check
      _
    $region35: #{tpu_custom_call.1} parent=1 // pred_check_branch
      %385 = sbr.rel (0) target = $region37
    $region36: #{tpu_custom_call.1} parent=1 // pred_region
      %387 = vsyncadd [#allocation6], 0
      %s389 = sshll.u32 [#allocation5], 4
      %s390 = int_to_ptr.vmem [resolvable:$true] %s389
      %s391 = sshll.u32 %s6, 4
      %s392 = int_to_ptr.hbm [resolvable:$true] %s391
      %394 = dma.vmem_to_hbm [thread:$0]  %s390, 32, %s392, [#allocation6]
    $region37: #{tpu_custom_call.1} parent=1 // pred_fallthru
      _
    // Predicated region
    $region38: #{tpu_custom_call.1} parent=1 // pred_check
      _
    $region39: #{tpu_custom_call.1} parent=1 // pred_check_branch
      %396 = sbr.rel (0) target = $region41
    $region40: #{tpu_custom_call.1} parent=1 // pred_region
      %398 = dma.done [#allocation4], 32
    $region41: #{tpu_custom_call.1} parent=1 // pred_fallthru
      _
    // Predicated region
    $region42: #{tpu_custom_call.1} parent=1 // pred_check
      _
    $region43: #{tpu_custom_call.1} parent=1 // pred_check_branch
      %400 = sbr.rel (0) target = $region45
    $region44: #{tpu_custom_call.1} parent=1 // pred_region
      %402 = dma.done [#allocation6], 32
    $region45: #{tpu_custom_call.1} parent=1 // pred_fallthru
      _
    %403 = vsyncpa [#allocation4], 1
    %404 = vsyncpa [#allocation6], 1

</llo_original>
